<compile_context>
chip_gen: v7x
topology: tpu7x:2x2x1
jax: 0.10.0
libtpu: 0.0.40
codegen_flags: <defaults>
</compile_context>

<pallas_src>
import functools

import jax
import jax.numpy as jnp
from jax.experimental import pallas as pl
from jax.experimental.pallas import tpu as pltpu


def _round_up(x, m):
    return ((x + m - 1) // m) * m


def _fused_pcl_kernel(feat_ref, feat_i_ref, lab_ref, cent_ref, cent_i_ref,
                      seg_ref, out_ref, *, m_num, batch_size, tile_b,
                      tiles_per_par):
    p = pl.program_id(0)          # parallel slice (megacore on v7x)
    i = pl.program_id(1)          # batch-tile step within the slice (reduction)

    @pl.when(i == 0)
    def _():
        out_ref[...] = jnp.zeros_like(out_ref)

    feat = feat_ref[...]          # (tile_b, D)  view "au" features
    feat_i = feat_i_ref[...]      # (tile_b, D)  view "or" features
    cent = cent_ref[...]          # (C_pad, D)   1/phi already folded in
    cent_i = cent_i_ref[...]      # (C_pad, D)
    seg = seg_ref[...]            # (C_pad, 1) int32, -1 on padded rows

    c_pad = cent.shape[0]
    tb = feat.shape[0]

    # Contract the feature dim of both operands: (C_pad, D) x (tile_b, D) -> (C_pad, tile_b)
    dn = (((1,), (1,)), ((), ()))
    logits_or = jax.lax.dot_general(cent, feat_i, dn,
                                    preferred_element_type=jnp.float32)
    logits_au = jax.lax.dot_general(cent_i, feat, dn,
                                    preferred_element_type=jnp.float32)

    row_idx = jax.lax.broadcasted_iota(jnp.int32, (c_pad, tb), 0)
    col = (jax.lax.broadcasted_iota(jnp.int32, (1, tb), 1)
           + (p * tiles_per_par + i) * tile_b)
    valid = (col < batch_size).astype(jnp.float32)            # (1, tb) tail mask

    def view_contrib(logits, lab_row0):
        # sum_k sum_l ( logit[lab_k[l], l] - logsumexp_{i in segment k} logit[i, l] )
        contrib = jnp.zeros((1, tb), jnp.float32)
        for k in range(m_num):                                # static tiny loop
            seg_mask = seg == k                               # (C_pad, 1)
            masked = jnp.where(seg_mask, logits, -jnp.inf)
            m_k = jnp.max(masked, axis=0, keepdims=True)      # (1, tb)
            e_k = jnp.where(seg_mask, jnp.exp(logits - m_k), 0.0)
            lse_k = m_k + jnp.log(jnp.sum(e_k, axis=0, keepdims=True))
            lab_k = lab_ref[lab_row0 + k:lab_row0 + k + 1, :]  # (1, tb) global ids
            pos_k = jnp.sum(jnp.where(row_idx == lab_k, logits, 0.0),
                            axis=0, keepdims=True)
            contrib = contrib + (pos_k - lse_k)
        return contrib

    total = view_contrib(logits_or, 0) + view_contrib(logits_au, m_num)
    out_ref[...] = out_ref[...] + (valid * total)[None]       # lane-wise accumulate


@functools.partial(jax.jit, static_argnames=("tile_b",))
def pcl_cld_loss(features, features_I, M_kmeans, M_kmeans_I,
                 concentrations, concentrations_I, labels, labels_I, lb,
                 *, tile_b=None):
    """Forward pass of PclCldLoss. M_* / concentrations / labels are length-M lists."""
    m_num = len(concentrations)
    B, D = features.shape
    itemsize = jnp.dtype(features.dtype).itemsize

    # ---- trace-time fusion: fold 1/phi into centroids, concat all clusterings ----
    counts = [int(c.shape[0]) for c in concentrations]
    c_total = sum(counts)
    c_pad = max(8, _round_up(c_total, 8))

    cent_rows, cent_i_rows, seg_rows, lab_rows, lab_i_rows = [], [], [], [], []
    off = 0
    for k in range(m_num):
        inv = (1.0 / concentrations[k].astype(jnp.float32))[:, None]
        inv_i = (1.0 / concentrations_I[k].astype(jnp.float32))[:, None]
        cent_rows.append((M_kmeans[k].astype(jnp.float32) * inv)
                         .astype(M_kmeans[k].dtype))
        cent_i_rows.append((M_kmeans_I[k].astype(jnp.float32) * inv_i)
                           .astype(M_kmeans_I[k].dtype))
        seg_rows.append(jnp.full((counts[k],), k, jnp.int32))
        lab_rows.append(labels[k].astype(jnp.int32) + off)
        lab_i_rows.append(labels_I[k].astype(jnp.int32) + off)
        off += counts[k]

    pad_c = c_pad - c_total
    cent_all = jnp.concatenate(cent_rows, axis=0)
    cent_i_all = jnp.concatenate(cent_i_rows, axis=0)
    seg_all = jnp.concatenate(seg_rows)
    if pad_c:
        cent_all = jnp.pad(cent_all, ((0, pad_c), (0, 0)))
        cent_i_all = jnp.pad(cent_i_all, ((0, pad_c), (0, 0)))
        seg_all = jnp.pad(seg_all, (0, pad_c), constant_values=-1)
    seg_ids = seg_all.reshape(c_pad, 1)
    # rows 0..M-1: labels for view "or"; rows M..2M-1: labels for view "au"
    lab_all = jnp.stack(lab_rows + lab_i_rows, axis=0)         # (2M, B)

    # ---- batch tiling: big tiles, capped by a VMEM budget safe for v7x (64 MiB) ----
    if tile_b is None:
        stream_budget = 16 * 1024 * 1024                       # 2 streams x 2 buffers
        cap = max(128, (stream_budget // (4 * D * itemsize)) // 128 * 128)
        tile_b = int(min(4096, cap, _round_up(B, 128)))
    assert tile_b % 128 == 0

    n_tiles = -(-B // tile_b)
    num_par = 2 if n_tiles >= 2 else 1                         # v7x: use both TCs
    tiles_per_par = -(-n_tiles // num_par)
    b_pad = num_par * tiles_per_par * tile_b
    pad_b = b_pad - B
    if pad_b:
        features = jnp.pad(features, ((0, pad_b), (0, 0)))
        features_I = jnp.pad(features_I, ((0, pad_b), (0, 0)))
        lab_all = jnp.pad(lab_all, ((0, 0), (0, pad_b)))

    est = (2 * 2 * tile_b * D * itemsize                       # feature streams
           + 2 * 2 * c_pad * D * 4                             # centroids
           + 2 * 2 * m_num * 2 * tile_b * 4                    # labels
           + 2 * c_pad * 4 + 2 * tile_b * 4                    # seg ids + output
           + 4 * c_pad * tile_b * 4)                           # logits temporaries
    vmem_limit = int(min(48 * 1024 * 1024, max(16 * 1024 * 1024, 2 * est)))

    kernel = functools.partial(_fused_pcl_kernel, m_num=m_num, batch_size=B,
                               tile_b=tile_b, tiles_per_par=tiles_per_par)

    partial_sums = pl.pallas_call(
        kernel,
        out_shape=jax.ShapeDtypeStruct((num_par, 1, tile_b), jnp.float32),
        grid=(num_par, tiles_per_par),
        in_specs=[
            pl.BlockSpec((tile_b, D), lambda p, i: (p * tiles_per_par + i, 0)),
            pl.BlockSpec((tile_b, D), lambda p, i: (p * tiles_per_par + i, 0)),
            pl.BlockSpec((2 * m_num, tile_b),
                         lambda p, i: (0, p * tiles_per_par + i)),
            pl.BlockSpec((c_pad, D), lambda p, i: (0, 0)),     # centroids (resident)
            pl.BlockSpec((c_pad, D), lambda p, i: (0, 0)),     # centroids_I (resident)
            pl.BlockSpec((c_pad, 1), lambda p, i: (0, 0)),     # segment ids (resident)
        ],
        out_specs=pl.BlockSpec((1, 1, tile_b), lambda p, i: (p, 0, 0)),
        compiler_params=pltpu.CompilerParams(
            dimension_semantics=("parallel", "arbitrary"),
            vmem_limit_bytes=vmem_limit),
    )(features, features_I, lab_all, cent_all, cent_i_all, seg_ids)

    total = jnp.sum(partial_sums)                              # padded cols are 0
    return (1.0 / B) * lb * (-1.0 / m_num) * 0.5 * total


def _reference(features, features_I, M_kmeans, M_kmeans_I,
               concentrations, concentrations_I, labels, labels_I, lb):
    """Pure-JAX transcription of the PyTorch forward."""
    M_num = len(concentrations)
    B = features.shape[0]
    M_logits, M_logits_I = [], []
    for k in range(M_num):
        inv = (1.0 / concentrations[k])[:, None]
        inv_I = (1.0 / concentrations_I[k])[:, None]
        g_or = (M_kmeans[k] @ features_I.T) * inv              # (c, B)
        g_au = (M_kmeans_I[k] @ features.T) * inv_I
        exp_or, exp_au = jnp.exp(g_or), jnp.exp(g_au)
        sum_or, sum_au = exp_or.sum(0), exp_au.sum(0)
        pos_or = exp_or[labels[k], jnp.arange(B)]
        pos_au = exp_au[labels_I[k], jnp.arange(B)]
        M_logits.append(jnp.sum(jnp.log(pos_or / sum_or)))
        M_logits_I.append(jnp.sum(jnp.log(pos_au / sum_au)))
    return (1.0 / B) * lb * (-1.0 / M_num) * 0.5 * (sum(M_logits) + sum(M_logits_I))


if __name__ == "__main__":
    B, D = 200, 32                 # batch, feature dim (small demo shapes)
    cluster_counts = [12, 20]      # M_num = 2 clusterings with different #clusters
    LB = 0.5

    key = jax.random.PRNGKey(0)
    keys = jax.random.split(key, 16)
    features = 0.5 * jax.random.normal(keys[0], (B, D), dtype=jnp.float32)
    features_I = 0.5 * jax.random.normal(keys[1], (B, D), dtype=jnp.float32)

    M_kmeans, M_kmeans_I = [], []
    concentrations, concentrations_I = [], []
    labels, labels_I = [], []
    for idx, c in enumerate(cluster_counts):
        kk = jax.random.split(keys[2 + idx], 6)
        M_kmeans.append(0.5 * jax.random.normal(kk[0], (c, D), dtype=jnp.float32))
        M_kmeans_I.append(0.5 * jax.random.normal(kk[1], (c, D), dtype=jnp.float32))
        concentrations.append(jax.random.uniform(kk[2], (c,), jnp.float32, 0.5, 2.0))
        concentrations_I.append(jax.random.uniform(kk[3], (c,), jnp.float32, 0.5, 2.0))
        labels.append(jax.random.randint(kk[4], (B,), 0, c, dtype=jnp.int32))
        labels_I.append(jax.random.randint(kk[5], (B,), 0, c, dtype=jnp.int32))

    ref = jax.block_until_ready(
        _reference(features, features_I, M_kmeans, M_kmeans_I,
                   concentrations, concentrations_I, labels, labels_I, LB))

    # Default auto tile (single tile, single parallel slice).
    loss = jax.block_until_ready(
        pcl_cld_loss(features, features_I, M_kmeans, M_kmeans_I,
                     concentrations, concentrations_I, labels, labels_I, LB))
    assert jnp.isfinite(loss), loss
    assert jnp.allclose(loss, ref, rtol=5e-4, atol=1e-5), (float(loss), float(ref))

    # Small tile forces 2 batch tiles -> exercises the parallel axis + tail masking.
    loss_small = jax.block_until_ready(
        pcl_cld_loss(features, features_I, M_kmeans, M_kmeans_I,
                     concentrations, concentrations_I, labels, labels_I, LB,
                     tile_b=128))
    assert jnp.isfinite(loss_small), loss_small
    assert jnp.allclose(loss_small, ref, rtol=5e-4, atol=1e-5), (
        float(loss_small), float(ref))

    print("KERNEL_OK")
</pallas_src>

<mosaic_0001>
module attributes {stable_mosaic.version = 11 : i64} {
  func.func @_fused_pcl_kernel(%arg0: i32, %arg1: i32, %arg2: memref<256x32xf32, #tpu.memory_space<vmem>>, %arg3: memref<256x32xf32, #tpu.memory_space<vmem>>, %arg4: memref<4x256xi32, #tpu.memory_space<vmem>>, %arg5: memref<32x32xf32, #tpu.memory_space<vmem>>, %arg6: memref<32x32xf32, #tpu.memory_space<vmem>>, %arg7: memref<32x1xi32, #tpu.memory_space<vmem>>, %arg8: memref<1x1x256xf32, #tpu.memory_space<vmem>>) attributes {dimension_semantics = [#tpu.dimension_semantics<parallel>, #tpu.dimension_semantics<arbitrary>], iteration_bounds = array<i64: 1, 1>, scalar_prefetch = 0 : i64, scratch_operands = 0 : i64, tpu.core_type = #tpu.core_type<tc>, window_params = [{transform_indices = @transform_0, window_bounds = array<i64: 256, 32>}, {transform_indices = @transform_1, window_bounds = array<i64: 256, 32>}, {transform_indices = @transform_2, window_bounds = array<i64: 4, 256>}, {pipeline_mode = #tpu.pipeline_mode<synchronous>, transform_indices = @transform_3, window_bounds = array<i64: 32, 32>}, {pipeline_mode = #tpu.pipeline_mode<synchronous>, transform_indices = @transform_4, window_bounds = array<i64: 32, 32>}, {pipeline_mode = #tpu.pipeline_mode<synchronous>, transform_indices = @transform_5, window_bounds = array<i64: 32, 1>}, {transform_indices = @transform_6, window_bounds = array<i64: 1, 1, 256>}]} {
    %c0_i32 = arith.constant 0 : i32
    %0 = arith.cmpi eq, %arg1, %c0_i32 : i32
    %1 = arith.extui %0 : i1 to i32
    %c0_i32_0 = arith.constant 0 : i32
    %2 = arith.cmpi ne, %1, %c0_i32_0 : i32
    scf.if %2 {
      %cst_52 = arith.constant 0.000000e+00 : f32
      %141 = vector.broadcast %cst_52 : f32 to vector<1x1x256xf32>
      %c0_53 = arith.constant 0 : index
      %c0_54 = arith.constant 0 : index
      %c0_55 = arith.constant 0 : index
      %142 = vector.load %arg8[%c0_53, %c0_54, %c0_55] : memref<1x1x256xf32, #tpu.memory_space<vmem>>, vector<1x1x256xf32>
      tpu.vector_store %arg8[%c0_53, %c0_54, %c0_55], %141 {strides = array<i32>} : memref<1x1x256xf32, #tpu.memory_space<vmem>>, vector<1x1x256xf32>,
    } else {
    }
    %c0 = arith.constant 0 : index
    %c0_1 = arith.constant 0 : index
    %3 = vector.load %arg2[%c0, %c0_1] : memref<256x32xf32, #tpu.memory_space<vmem>>, vector<256x32xf32>
    %c0_2 = arith.constant 0 : index
    %c0_3 = arith.constant 0 : index
    %4 = vector.load %arg3[%c0_2, %c0_3] : memref<256x32xf32, #tpu.memory_space<vmem>>, vector<256x32xf32>
    %c0_4 = arith.constant 0 : index
    %c0_5 = arith.constant 0 : index
    %5 = vector.load %arg5[%c0_4, %c0_5] : memref<32x32xf32, #tpu.memory_space<vmem>>, vector<32x32xf32>
    %c0_6 = arith.constant 0 : index
    %c0_7 = arith.constant 0 : index
    %6 = vector.load %arg6[%c0_6, %c0_7] : memref<32x32xf32, #tpu.memory_space<vmem>>, vector<32x32xf32>
    %c0_8 = arith.constant 0 : index
    %c0_9 = arith.constant 0 : index
    %7 = vector.load %arg7[%c0_8, %c0_9] : memref<32x1xi32, #tpu.memory_space<vmem>>, vector<32x1xi32>
    %cst = arith.constant dense<0.000000e+00> : vector<32x256xf32>
    %8 = tpu.matmul %5, %4, %cst {dimension_numbers = #tpu.dot_dimension_numbers<[1], [1], [0], [0], [0, 0, 1, 0], [], []>} : vector<32x32xf32>, vector<256x32xf32>, vector<32x256xf32> -> vector<32x256xf32>
    %cst_10 = arith.constant dense<0.000000e+00> : vector<32x256xf32>
    %9 = tpu.matmul %6, %3, %cst_10 {dimension_numbers = #tpu.dot_dimension_numbers<[1], [1], [0], [0], [0, 0, 1, 0], [], []>} : vector<32x32xf32>, vector<256x32xf32>, vector<32x256xf32> -> vector<32x256xf32>
    %10 = tpu.iota {dimensions = array<i32: 0>} : vector<32x256xi32>
    %11 = tpu.iota {dimensions = array<i32: 1>} : vector<1x256xi32>
    %c1_i32 = arith.constant 1 : i32
    %12 = arith.muli %arg0, %c1_i32 : i32
    %13 = arith.addi %12, %arg1 : i32
    %c256_i32 = arith.constant 256 : i32
    %14 = arith.muli %13, %c256_i32 : i32
    %15 = vector.broadcast %14 : i32 to vector<1x256xi32>
    %16 = arith.addi %11, %15 : vector<1x256xi32>
    %c200_i32 = arith.constant 200 : i32
    %17 = vector.broadcast %c200_i32 : i32 to vector<1x256xi32>
    %18 = arith.cmpi slt, %16, %17 : vector<1x256xi32>
    %19 = arith.extui %18 : vector<1x256xi1> to vector<1x256xi32>
    %20 = arith.sitofp %19 : vector<1x256xi32> to vector<1x256xf32>
    %cst_11 = arith.constant 0.000000e+00 : f32
    %21 = vector.broadcast %cst_11 : f32 to vector<1x256xf32>
    %c0_i32_12 = arith.constant 0 : i32
    %22 = vector.broadcast %c0_i32_12 : i32 to vector<32x1xi32>
    %23 = arith.cmpi eq, %7, %22 : vector<32x1xi32>
    %cst_13 = arith.constant 0xFF800000 : f32
    %24 = vector.shape_cast %23 : vector<32x1xi1> to vector<32x1xi1>
    %25 = vector.broadcast %24 : vector<32x1xi1> to vector<32x256xi1>
    %26 = vector.broadcast %cst_13 : f32 to vector<32x256xf32>
    %27 = arith.select %25, %8, %26 : vector<32x256xi1>, vector<32x256xf32>
    %cst_14 = arith.constant dense<0xFF800000> : vector<256xf32>
    %28 = vector.multi_reduction <maximumf>, %27, %cst_14 [0] : vector<32x256xf32> to vector<256xf32>
    %29 = vector.shape_cast %28 : vector<256xf32> to vector<1x256xf32>
    %30 = vector.broadcast %29 : vector<1x256xf32> to vector<32x256xf32>
    %31 = arith.subf %8, %30 : vector<32x256xf32>
    %32 = math.exp %31 : vector<32x256xf32>
    %cst_15 = arith.constant 0.000000e+00 : f32
    %33 = vector.shape_cast %23 : vector<32x1xi1> to vector<32x1xi1>
    %34 = vector.broadcast %33 : vector<32x1xi1> to vector<32x256xi1>
    %35 = vector.broadcast %cst_15 : f32 to vector<32x256xf32>
    %36 = arith.select %34, %32, %35 : vector<32x256xi1>, vector<32x256xf32>
    %cst_16 = arith.constant dense<0.000000e+00> : vector<256xf32>
    %37 = vector.multi_reduction <add>, %36, %cst_16 [0] : vector<32x256xf32> to vector<256xf32>
    %38 = vector.shape_cast %37 : vector<256xf32> to vector<1x256xf32>
    %39 = math.log %38 : vector<1x256xf32>
    %40 = arith.addf %29, %39 : vector<1x256xf32>
    %c0_17 = arith.constant 0 : index
    %c0_18 = arith.constant 0 : index
    %41 = vector.load %arg4[%c0_17, %c0_18] : memref<4x256xi32, #tpu.memory_space<vmem>>, vector<1x256xi32>
    %42 = vector.broadcast %41 : vector<1x256xi32> to vector<32x256xi32>
    %43 = arith.cmpi eq, %10, %42 : vector<32x256xi32>
    %cst_19 = arith.constant 0.000000e+00 : f32
    %44 = vector.broadcast %cst_19 : f32 to vector<32x256xf32>
    %45 = arith.select %43, %8, %44 : vector<32x256xi1>, vector<32x256xf32>
    %cst_20 = arith.constant dense<0.000000e+00> : vector<256xf32>
    %46 = vector.multi_reduction <add>, %45, %cst_20 [0] : vector<32x256xf32> to vector<256xf32>
    %47 = vector.shape_cast %46 : vector<256xf32> to vector<1x256xf32>
    %48 = arith.subf %47, %40 : vector<1x256xf32>
    %49 = arith.addf %21, %48 : vector<1x256xf32>
    %c1_i32_21 = arith.constant 1 : i32
    %50 = vector.broadcast %c1_i32_21 : i32 to vector<32x1xi32>
    %51 = arith.cmpi eq, %7, %50 : vector<32x1xi32>
    %cst_22 = arith.constant 0xFF800000 : f32
    %52 = vector.shape_cast %51 : vector<32x1xi1> to vector<32x1xi1>
    %53 = vector.broadcast %52 : vector<32x1xi1> to vector<32x256xi1>
    %54 = vector.broadcast %cst_22 : f32 to vector<32x256xf32>
    %55 = arith.select %53, %8, %54 : vector<32x256xi1>, vector<32x256xf32>
    %cst_23 = arith.constant dense<0xFF800000> : vector<256xf32>
    %56 = vector.multi_reduction <maximumf>, %55, %cst_23 [0] : vector<32x256xf32> to vector<256xf32>
    %57 = vector.shape_cast %56 : vector<256xf32> to vector<1x256xf32>
    %58 = vector.broadcast %57 : vector<1x256xf32> to vector<32x256xf32>
    %59 = arith.subf %8, %58 : vector<32x256xf32>
    %60 = math.exp %59 : vector<32x256xf32>
    %cst_24 = arith.constant 0.000000e+00 : f32
    %61 = vector.shape_cast %51 : vector<32x1xi1> to vector<32x1xi1>
    %62 = vector.broadcast %61 : vector<32x1xi1> to vector<32x256xi1>
    %63 = vector.broadcast %cst_24 : f32 to vector<32x256xf32>
    %64 = arith.select %62, %60, %63 : vector<32x256xi1>, vector<32x256xf32>
    %cst_25 = arith.constant dense<0.000000e+00> : vector<256xf32>
    %65 = vector.multi_reduction <add>, %64, %cst_25 [0] : vector<32x256xf32> to vector<256xf32>
    %66 = vector.shape_cast %65 : vector<256xf32> to vector<1x256xf32>
    %67 = math.log %66 : vector<1x256xf32>
    %68 = arith.addf %57, %67 : vector<1x256xf32>
    %c1 = arith.constant 1 : index
    %c0_26 = arith.constant 0 : index
    %69 = vector.load %arg4[%c1, %c0_26] : memref<4x256xi32, #tpu.memory_space<vmem>>, vector<1x256xi32>
    %70 = vector.broadcast %69 : vector<1x256xi32> to vector<32x256xi32>
    %71 = arith.cmpi eq, %10, %70 : vector<32x256xi32>
    %cst_27 = arith.constant 0.000000e+00 : f32
    %72 = vector.broadcast %cst_27 : f32 to vector<32x256xf32>
    %73 = arith.select %71, %8, %72 : vector<32x256xi1>, vector<32x256xf32>
    %cst_28 = arith.constant dense<0.000000e+00> : vector<256xf32>
    %74 = vector.multi_reduction <add>, %73, %cst_28 [0] : vector<32x256xf32> to vector<256xf32>
    %75 = vector.shape_cast %74 : vector<256xf32> to vector<1x256xf32>
    %76 = arith.subf %75, %68 : vector<1x256xf32>
    %77 = arith.addf %49, %76 : vector<1x256xf32>
    %cst_29 = arith.constant 0.000000e+00 : f32
    %78 = vector.broadcast %cst_29 : f32 to vector<1x256xf32>
    %c0_i32_30 = arith.constant 0 : i32
    %79 = vector.broadcast %c0_i32_30 : i32 to vector<32x1xi32>
    %80 = arith.cmpi eq, %7, %79 : vector<32x1xi32>
    %cst_31 = arith.constant 0xFF800000 : f32
    %81 = vector.shape_cast %80 : vector<32x1xi1> to vector<32x1xi1>
    %82 = vector.broadcast %81 : vector<32x1xi1> to vector<32x256xi1>
    %83 = vector.broadcast %cst_31 : f32 to vector<32x256xf32>
    %84 = arith.select %82, %9, %83 : vector<32x256xi1>, vector<32x256xf32>
    %cst_32 = arith.constant dense<0xFF800000> : vector<256xf32>
    %85 = vector.multi_reduction <maximumf>, %84, %cst_32 [0] : vector<32x256xf32> to vector<256xf32>
    %86 = vector.shape_cast %85 : vector<256xf32> to vector<1x256xf32>
    %87 = vector.broadcast %86 : vector<1x256xf32> to vector<32x256xf32>
    %88 = arith.subf %9, %87 : vector<32x256xf32>
    %89 = math.exp %88 : vector<32x256xf32>
    %cst_33 = arith.constant 0.000000e+00 : f32
    %90 = vector.shape_cast %80 : vector<32x1xi1> to vector<32x1xi1>
    %91 = vector.broadcast %90 : vector<32x1xi1> to vector<32x256xi1>
    %92 = vector.broadcast %cst_33 : f32 to vector<32x256xf32>
    %93 = arith.select %91, %89, %92 : vector<32x256xi1>, vector<32x256xf32>
    %cst_34 = arith.constant dense<0.000000e+00> : vector<256xf32>
    %94 = vector.multi_reduction <add>, %93, %cst_34 [0] : vector<32x256xf32> to vector<256xf32>
    %95 = vector.shape_cast %94 : vector<256xf32> to vector<1x256xf32>
    %96 = math.log %95 : vector<1x256xf32>
    %97 = arith.addf %86, %96 : vector<1x256xf32>
    %c2 = arith.constant 2 : index
    %c0_35 = arith.constant 0 : index
    %98 = vector.load %arg4[%c2, %c0_35] : memref<4x256xi32, #tpu.memory_space<vmem>>, vector<1x256xi32>
    %99 = vector.broadcast %98 : vector<1x256xi32> to vector<32x256xi32>
    %100 = arith.cmpi eq, %10, %99 : vector<32x256xi32>
    %cst_36 = arith.constant 0.000000e+00 : f32
    %101 = vector.broadcast %cst_36 : f32 to vector<32x256xf32>
    %102 = arith.select %100, %9, %101 : vector<32x256xi1>, vector<32x256xf32>
    %cst_37 = arith.constant dense<0.000000e+00> : vector<256xf32>
    %103 = vector.multi_reduction <add>, %102, %cst_37 [0] : vector<32x256xf32> to vector<256xf32>
    %104 = vector.shape_cast %103 : vector<256xf32> to vector<1x256xf32>
    %105 = arith.subf %104, %97 : vector<1x256xf32>
    %106 = arith.addf %78, %105 : vector<1x256xf32>
    %c1_i32_38 = arith.constant 1 : i32
    %107 = vector.broadcast %c1_i32_38 : i32 to vector<32x1xi32>
    %108 = arith.cmpi eq, %7, %107 : vector<32x1xi32>
    %cst_39 = arith.constant 0xFF800000 : f32
    %109 = vector.shape_cast %108 : vector<32x1xi1> to vector<32x1xi1>
    %110 = vector.broadcast %109 : vector<32x1xi1> to vector<32x256xi1>
    %111 = vector.broadcast %cst_39 : f32 to vector<32x256xf32>
    %112 = arith.select %110, %9, %111 : vector<32x256xi1>, vector<32x256xf32>
    %cst_40 = arith.constant dense<0xFF800000> : vector<256xf32>
    %113 = vector.multi_reduction <maximumf>, %112, %cst_40 [0] : vector<32x256xf32> to vector<256xf32>
    %114 = vector.shape_cast %113 : vector<256xf32> to vector<1x256xf32>
    %115 = vector.broadcast %114 : vector<1x256xf32> to vector<32x256xf32>
    %116 = arith.subf %9, %115 : vector<32x256xf32>
    %117 = math.exp %116 : vector<32x256xf32>
    %cst_41 = arith.constant 0.000000e+00 : f32
    %118 = vector.shape_cast %108 : vector<32x1xi1> to vector<32x1xi1>
    %119 = vector.broadcast %118 : vector<32x1xi1> to vector<32x256xi1>
    %120 = vector.broadcast %cst_41 : f32 to vector<32x256xf32>
    %121 = arith.select %119, %117, %120 : vector<32x256xi1>, vector<32x256xf32>
    %cst_42 = arith.constant dense<0.000000e+00> : vector<256xf32>
    %122 = vector.multi_reduction <add>, %121, %cst_42 [0] : vector<32x256xf32> to vector<256xf32>
    %123 = vector.shape_cast %122 : vector<256xf32> to vector<1x256xf32>
    %124 = math.log %123 : vector<1x256xf32>
    %125 = arith.addf %114, %124 : vector<1x256xf32>
    %c3 = arith.constant 3 : index
    %c0_43 = arith.constant 0 : index
    %126 = vector.load %arg4[%c3, %c0_43] : memref<4x256xi32, #tpu.memory_space<vmem>>, vector<1x256xi32>
    %127 = vector.broadcast %126 : vector<1x256xi32> to vector<32x256xi32>
    %128 = arith.cmpi eq, %10, %127 : vector<32x256xi32>
    %cst_44 = arith.constant 0.000000e+00 : f32
    %129 = vector.broadcast %cst_44 : f32 to vector<32x256xf32>
    %130 = arith.select %128, %9, %129 : vector<32x256xi1>, vector<32x256xf32>
    %cst_45 = arith.constant dense<0.000000e+00> : vector<256xf32>
    %131 = vector.multi_reduction <add>, %130, %cst_45 [0] : vector<32x256xf32> to vector<256xf32>
    %132 = vector.shape_cast %131 : vector<256xf32> to vector<1x256xf32>
    %133 = arith.subf %132, %125 : vector<1x256xf32>
    %134 = arith.addf %106, %133 : vector<1x256xf32>
    %135 = arith.addf %77, %134 : vector<1x256xf32>
    %c0_46 = arith.constant 0 : index
    %c0_47 = arith.constant 0 : index
    %c0_48 = arith.constant 0 : index
    %136 = vector.load %arg8[%c0_46, %c0_47, %c0_48] : memref<1x1x256xf32, #tpu.memory_space<vmem>>, vector<1x1x256xf32>
    %137 = arith.mulf %20, %135 : vector<1x256xf32>
    %138 = vector.shape_cast %137 : vector<1x256xf32> to vector<1x1x256xf32>
    %139 = arith.addf %136, %138 : vector<1x1x256xf32>
    %c0_49 = arith.constant 0 : index
    %c0_50 = arith.constant 0 : index
    %c0_51 = arith.constant 0 : index
    %140 = vector.load %arg8[%c0_49, %c0_50, %c0_51] : memref<1x1x256xf32, #tpu.memory_space<vmem>>, vector<1x1x256xf32>
    tpu.vector_store %arg8[%c0_49, %c0_50, %c0_51], %139 {strides = array<i32>} : memref<1x1x256xf32, #tpu.memory_space<vmem>>, vector<1x1x256xf32>,
    return
  }
  func.func @transform_0(%arg0: i32, %arg1: i32) -> (i32, i32) {
    %c1_i32 = arith.constant 1 : i32
    %0 = arith.muli %arg0, %c1_i32 : i32
    %1 = arith.addi %0, %arg1 : i32
    %c0_i32 = arith.constant 0 : i32
    %c0_i32_0 = arith.constant 0 : i32
    return %1, %c0_i32 : i32, i32
  }
  func.func @transform_1(%arg0: i32, %arg1: i32) -> (i32, i32) {
    %c1_i32 = arith.constant 1 : i32
    %0 = arith.muli %arg0, %c1_i32 : i32
    %1 = arith.addi %0, %arg1 : i32
    %c0_i32 = arith.constant 0 : i32
    %c0_i32_0 = arith.constant 0 : i32
    return %1, %c0_i32 : i32, i32
  }
  func.func @transform_2(%arg0: i32, %arg1: i32) -> (i32, i32) {
    %c1_i32 = arith.constant 1 : i32
    %0 = arith.muli %arg0, %c1_i32 : i32
    %1 = arith.addi %0, %arg1 : i32
    %c0_i32 = arith.constant 0 : i32
    %c0_i32_0 = arith.constant 0 : i32
    return %c0_i32, %1 : i32, i32
  }
  func.func @transform_3(%arg0: i32, %arg1: i32) -> (i32, i32) {
    %c0_i32 = arith.constant 0 : i32
    %c0_i32_0 = arith.constant 0 : i32
    %c0_i32_1 = arith.constant 0 : i32
    return %c0_i32, %c0_i32_0 : i32, i32
  }
  func.func @transform_4(%arg0: i32, %arg1: i32) -> (i32, i32) {
    %c0_i32 = arith.constant 0 : i32
    %c0_i32_0 = arith.constant 0 : i32
    %c0_i32_1 = arith.constant 0 : i32
    return %c0_i32, %c0_i32_0 : i32, i32
  }
  func.func @transform_5(%arg0: i32, %arg1: i32) -> (i32, i32) {
    %c0_i32 = arith.constant 0 : i32
    %c0_i32_0 = arith.constant 0 : i32
    %c0_i32_1 = arith.constant 0 : i32
    return %c0_i32, %c0_i32_0 : i32, i32
  }
  func.func @transform_6(%arg0: i32, %arg1: i32) -> (i32, i32, i32) {
    %c0_i32 = arith.constant 0 : i32
    %c0_i32_0 = arith.constant 0 : i32
    %c0_i32_1 = arith.constant 0 : i32
    return %arg0, %c0_i32, %c0_i32_0 : i32, i32, i32
  }
}

</mosaic_0001>

<llo_original>
// kernel: pcl_cld_loss.1
$region0: #{pcl_cld_loss.1}
  #allocation0 [shape = 'u32[]', space=smem, size = 0x4, offset = 0x4, fixed_abs, tag = 'smem constant byte address 0x4 - core index']
  #allocation1 [shape = 'u32[144,128]{1,0:T(1,128)}', space=vmem, size = 0x12000, scoped, tag = 'internal scratch']
  %s0 = inlined_call_operand.vmem [shape: f32[256,32], index: 0, kind: input, shape index: {}]
  %s1 = inlined_call_operand.vmem [shape: f32[256,32], index: 1, kind: input, shape index: {}]
  %s2 = inlined_call_operand.vmem [shape: s32[4,256], index: 2, kind: input, shape index: {}]
  %s3 = inlined_call_operand.vmem [shape: f32[32,32], index: 3, kind: input, shape index: {}]
  %s4 = inlined_call_operand.vmem [shape: f32[32,32], index: 4, kind: input, shape index: {}]
  %s5 = inlined_call_operand.vmem [shape: s32[32,1], index: 5, kind: input, shape index: {}]
  %s6 = inlined_call_operand.vmem [shape: f32[1,1,256], index: 6, kind: output, shape index: {}]
  %s7 = sld [smem:[#allocation0]]
  $region38: #{pcl_cld_loss.1} parent=0
    _
  %s9 = ssub.s32 1, %s7
  %s10 = scalar_select 0, %s9, %s7
  // Predicated region
  $region2: #{pcl_cld_loss.1} parent=0 // pred_check
    _
  $region3: #{pcl_cld_loss.1} parent=0 // pred_check_branch
    %12 = sbr.rel (0) target = $region5
  $region4: #{pcl_cld_loss.1} parent=0 // pred_region
    %s13 = sadd.s32 0, 0
    %s14 = smul.u32 32, %s13
    %p15 = scmp.lt.s32.totalorder %s14, 31
    %s16 = scalar_select %p15, %s14, 31
    %s17 = smul.addr %s16, 8
    %s18 = scalar_lea.vmem %s0, %s17
    %s19 = sadd.s32 0, 0
    %s20 = smul.u32 32, %s19
  $region5: #{pcl_cld_loss.1} parent=0 // pred_fallthru
    _
  // Predicated region
  $region6: #{pcl_cld_loss.1} parent=0 // pred_check
    _
  $region7: #{pcl_cld_loss.1} parent=0 // pred_check_branch
    %22 = sbr.rel (0) target = $region9
  $region8: #{pcl_cld_loss.1} parent=0 // pred_region
    %s23 = sadd.s32 0, 0
    %s24 = smul.u32 32, %s23
    %p25 = scmp.lt.s32.totalorder %s24, 31
    %s26 = scalar_select %p25, %s24, 31
    %s27 = smul.addr %s26, 8
    %s28 = scalar_lea.vmem %s1, %s27
    %s29 = sadd.s32 0, 0
    %s30 = smul.u32 32, %s29
  $region9: #{pcl_cld_loss.1} parent=0 // pred_fallthru
    _
  // Predicated region
  $region10: #{pcl_cld_loss.1} parent=0 // pred_check
    _
  $region11: #{pcl_cld_loss.1} parent=0 // pred_check_branch
    %32 = sbr.rel (0) target = $region13
  $region12: #{pcl_cld_loss.1} parent=0 // pred_region
    %s33 = sadd.s32 0, 0
    %s34 = smul.u32 2, %s33
    %p35 = scmp.lt.s32.totalorder %s34, 1
    %s36 = scalar_select %p35, %s34, 1
    %s37 = smul.addr %s36, 4
    %s38 = scalar_lea.vmem %s2, %s37
    %s39 = sadd.s32 0, 0
    %s40 = smul.u32 2, %s39
  $region13: #{pcl_cld_loss.1} parent=0 // pred_fallthru
    _
  // Predicated region
  $region14: #{pcl_cld_loss.1} parent=0 // pred_check
    _
  $region15: #{pcl_cld_loss.1} parent=0 // pred_check_branch
    %42 = sbr.rel (0) target = $region17
  $region16: #{pcl_cld_loss.1} parent=0 // pred_region
    _
  $region17: #{pcl_cld_loss.1} parent=0 // pred_fallthru
    _
  // Predicated region
  $region18: #{pcl_cld_loss.1} parent=0 // pred_check
    _
  $region19: #{pcl_cld_loss.1} parent=0 // pred_check_branch
    %44 = sbr.rel (0) target = $region21
  $region20: #{pcl_cld_loss.1} parent=0 // pred_region
    _
  $region21: #{pcl_cld_loss.1} parent=0 // pred_fallthru
    _
  // Predicated region
  $region22: #{pcl_cld_loss.1} parent=0 // pred_check
    _
  $region23: #{pcl_cld_loss.1} parent=0 // pred_check_branch
    %46 = sbr.rel (0) target = $region25
  $region24: #{pcl_cld_loss.1} parent=0 // pred_region
    _
  $region25: #{pcl_cld_loss.1} parent=0 // pred_fallthru
    _
  %s47 = sadd.s32 0, 0
  %s48 = smul.u32 32, %s47
  %p49 = scmp.lt.s32.totalorder %s48, 31
  %s50 = scalar_select %p49, %s48, 31
  %s51 = smul.addr %s50, 8
  %s52 = scalar_lea.vmem %s0, %s51
  %s53 = sadd.s32 0, 0
  %s54 = smul.u32 32, %s53
  %p55 = scmp.lt.s32.totalorder %s54, 31
  %s56 = scalar_select %p55, %s54, 31
  %s57 = smul.addr %s56, 8
  %s58 = scalar_lea.vmem %s1, %s57
  %s59 = sadd.s32 0, 0
  %s60 = smul.u32 2, %s59
  %p61 = scmp.lt.s32.totalorder %s60, 1
  %s62 = scalar_select %p61, %s60, 1
  %s63 = smul.addr %s62, 4
  %s64 = scalar_lea.vmem %s2, %s63
  %s65 = sadd.s32 0, 0
  %s66 = smul.u32 32, %s65
  %p67 = scmp.lt.s32.totalorder %s66, 31
  %s68 = scalar_select %p67, %s66, 31
  %s69 = smul.addr %s68, 8
  %s70 = scalar_lea.vmem %s0, %s69
  %s71 = sadd.s32 0, 0
  %s72 = smul.u32 32, %s71
  %s73 = sadd.s32 0, 0
  %s74 = smul.u32 32, %s73
  %p75 = scmp.lt.s32.totalorder %s74, 31
  %s76 = scalar_select %p75, %s74, 31
  %s77 = smul.addr %s76, 8
  %s78 = scalar_lea.vmem %s1, %s77
  %s79 = sadd.s32 0, 0
  %s80 = smul.u32 32, %s79
  %s81 = sadd.s32 0, 0
  %s82 = smul.u32 2, %s81
  %p83 = scmp.lt.s32.totalorder %s82, 1
  %s84 = scalar_select %p83, %s82, 1
  %s85 = smul.addr %s84, 4
  %s86 = scalar_lea.vmem %s2, %s85
  %s87 = sadd.s32 0, 0
  %s88 = smul.u32 2, %s87
  %p89 = scmp.eq.s32.totalorder 0, 0
  // Predicated region
  $region26: #{pcl_cld_loss.1} parent=0 // pred_check
    %p90 = pneg %p89
  $region27: #{pcl_cld_loss.1} parent=0 // pred_check_branch
    %92 = sbr.rel (%p90) target = $region29
  $region28: #{pcl_cld_loss.1} parent=0 // pred_region
    %v93 = vlaneseq
    %vm94 = vcmp.ge.s32.totalorder %v93, 0
    %vm95 = vcmp.lt.s32.totalorder %v93, 256
    %vm96 = vmand %vm94, %vm95
    %97 = vst.msk [vmem:[%s6] sm:$0x3] %vm96, 0.0
  $region29: #{pcl_cld_loss.1} parent=0 // pred_fallthru
    _
  %v98 = vld [vmem:[%s70] sm:$0xff]
  %v99 = vld [vmem:[%s70 + $0x8] sm:$0xff]
  %v100 = vld [vmem:[%s70 + $0x10] sm:$0xff]
  %v101 = vld [vmem:[%s70 + $0x18] sm:$0xff]
  %v102 = vld [vmem:[%s70 + $0x20] sm:$0xff]
  %v103 = vld [vmem:[%s70 + $0x28] sm:$0xff]
  %v104 = vld [vmem:[%s70 + $0x30] sm:$0xff]
  %v105 = vld [vmem:[%s70 + $0x38] sm:$0xff]
  %v106 = vld [vmem:[%s70 + $0x40] sm:$0xff]
  %v107 = vld [vmem:[%s70 + $0x48] sm:$0xff]
  %v108 = vld [vmem:[%s70 + $0x50] sm:$0xff]
  %v109 = vld [vmem:[%s70 + $0x58] sm:$0xff]
  %v110 = vld [vmem:[%s70 + $0x60] sm:$0xff]
  %v111 = vld [vmem:[%s70 + $0x68] sm:$0xff]
  %v112 = vld [vmem:[%s70 + $0x70] sm:$0xff]
  %v113 = vld [vmem:[%s70 + $0x78] sm:$0xff]
  %v114 = vld [vmem:[%s70 + $0x80] sm:$0xff]
  %v115 = vld [vmem:[%s70 + $0x88] sm:$0xff]
  %v116 = vld [vmem:[%s70 + $0x90] sm:$0xff]
  %v117 = vld [vmem:[%s70 + $0x98] sm:$0xff]
  %v118 = vld [vmem:[%s70 + $0xa0] sm:$0xff]
  %v119 = vld [vmem:[%s70 + $0xa8] sm:$0xff]
  %v120 = vld [vmem:[%s70 + $0xb0] sm:$0xff]
  %v121 = vld [vmem:[%s70 + $0xb8] sm:$0xff]
  %v122 = vld [vmem:[%s70 + $0xc0] sm:$0xff]
  %v123 = vld [vmem:[%s70 + $0xc8] sm:$0xff]
  %v124 = vld [vmem:[%s70 + $0xd0] sm:$0xff]
  %v125 = vld [vmem:[%s70 + $0xd8] sm:$0xff]
  %v126 = vld [vmem:[%s70 + $0xe0] sm:$0xff]
  %v127 = vld [vmem:[%s70 + $0xe8] sm:$0xff]
  %v128 = vld [vmem:[%s70 + $0xf0] sm:$0xff]
  %v129 = vld [vmem:[%s70 + $0xf8] sm:$0xff]
  %v130 = vld [vmem:[%s78] sm:$0xff]
  %v131 = vld [vmem:[%s78 + $0x8] sm:$0xff]
  %v132 = vld [vmem:[%s78 + $0x10] sm:$0xff]
  %v133 = vld [vmem:[%s78 + $0x18] sm:$0xff]
  %v134 = vld [vmem:[%s78 + $0x20] sm:$0xff]
  %v135 = vld [vmem:[%s78 + $0x28] sm:$0xff]
  %v136 = vld [vmem:[%s78 + $0x30] sm:$0xff]
  %v137 = vld [vmem:[%s78 + $0x38] sm:$0xff]
  %v138 = vld [vmem:[%s78 + $0x40] sm:$0xff]
  %v139 = vld [vmem:[%s78 + $0x48] sm:$0xff]
  %v140 = vld [vmem:[%s78 + $0x50] sm:$0xff]
  %v141 = vld [vmem:[%s78 + $0x58] sm:$0xff]
  %v142 = vld [vmem:[%s78 + $0x60] sm:$0xff]
  %v143 = vld [vmem:[%s78 + $0x68] sm:$0xff]
  %v144 = vld [vmem:[%s78 + $0x70] sm:$0xff]
  %v145 = vld [vmem:[%s78 + $0x78] sm:$0xff]
  %v146 = vld [vmem:[%s78 + $0x80] sm:$0xff]
  %v147 = vld [vmem:[%s78 + $0x88] sm:$0xff]
  %v148 = vld [vmem:[%s78 + $0x90] sm:$0xff]
  %v149 = vld [vmem:[%s78 + $0x98] sm:$0xff]
  %v150 = vld [vmem:[%s78 + $0xa0] sm:$0xff]
  %v151 = vld [vmem:[%s78 + $0xa8] sm:$0xff]
  %v152 = vld [vmem:[%s78 + $0xb0] sm:$0xff]
  %v153 = vld [vmem:[%s78 + $0xb8] sm:$0xff]
  %v154 = vld [vmem:[%s78 + $0xc0] sm:$0xff]
  %v155 = vld [vmem:[%s78 + $0xc8] sm:$0xff]
  %v156 = vld [vmem:[%s78 + $0xd0] sm:$0xff]
  %v157 = vld [vmem:[%s78 + $0xd8] sm:$0xff]
  %v158 = vld [vmem:[%s78 + $0xe0] sm:$0xff]
  %v159 = vld [vmem:[%s78 + $0xe8] sm:$0xff]
  %v160 = vld [vmem:[%s78 + $0xf0] sm:$0xff]
  %v161 = vld [vmem:[%s78 + $0xf8] sm:$0xff]
  %v162 = vld [vmem:[%s3] sm:$0xff]
  %v163 = vld [vmem:[%s3 + $0x8] sm:$0xff]
  %v164 = vld [vmem:[%s3 + $0x10] sm:$0xff]
  %v165 = vld [vmem:[%s3 + $0x18] sm:$0xff]
  %v166 = vld [vmem:[%s4] sm:$0xff]
  %v167 = vld [vmem:[%s4 + $0x8] sm:$0xff]
  %v168 = vld [vmem:[%s4 + $0x10] sm:$0xff]
  %v169 = vld [vmem:[%s4 + $0x18] sm:$0xff]
  %v170 = vld [vmem:[%s5] sm:$0xff]
  %v171 = vld [vmem:[%s5 + $0x8] sm:$0xff]
  %v172 = vld [vmem:[%s5 + $0x10] sm:$0xff]
  %v173 = vld [vmem:[%s5 + $0x18] sm:$0xff]
  %vm174 = vcmask 261120
  %v176 = vsel %vm174, %v162, 0
  %v179 = vsel %vm174, %v163, 0
  %v182 = vsel %vm174, %v164, 0
  %v185 = vsel %vm174, %v165, 0
  %v188 = vsel %vm174, %v130, 0
  %v191 = vsel %vm174, %v131, 0
  %v194 = vsel %vm174, %v132, 0
  %v197 = vsel %vm174, %v133, 0
  %v200 = vsel %vm174, %v134, 0
  %v203 = vsel %vm174, %v135, 0
  %v206 = vsel %vm174, %v136, 0
  %v209 = vsel %vm174, %v137, 0
  %v212 = vsel %vm174, %v138, 0
  %v215 = vsel %vm174, %v139, 0
  %v218 = vsel %vm174, %v140, 0
  %v221 = vsel %vm174, %v141, 0
  %v224 = vsel %vm174, %v142, 0
  %v227 = vsel %vm174, %v143, 0
  %v230 = vsel %vm174, %v144, 0
  %v233 = vsel %vm174, %v145, 0
  %v236 = vsel %vm174, %v146, 0
  %v239 = vsel %vm174, %v147, 0
  %v242 = vsel %vm174, %v148, 0
  %v245 = vsel %vm174, %v149, 0
  %v248 = vsel %vm174, %v150, 0
  %v251 = vsel %vm174, %v151, 0
  %v254 = vsel %vm174, %v152, 0
  %v257 = vsel %vm174, %v153, 0
  %v260 = vsel %vm174, %v154, 0
  %v263 = vsel %vm174, %v155, 0
  %v266 = vsel %vm174, %v156, 0
  %v269 = vsel %vm174, %v157, 0
  %v272 = vsel %vm174, %v158, 0
  %v275 = vsel %vm174, %v159, 0
  %v278 = vsel %vm174, %v160, 0
  %v281 = vsel %vm174, %v161, 0
  %283 = vmatprep.subr.mxu0 0.0
  %284 = vmatpush1.xpose.msra.mxu0 %v188
  %285 = vmatprep.subr.mxu0 0.0
  %286 = vmatpush1.xpose.msra.mxu0 %v191
  %287 = vmatprep.subr.mxu0 0.0
  %288 = vmatpush1.xpose.msra.mxu0 %v194
  %289 = vmatprep.subr.mxu0 0.0
  %290 = vmatpush1.xpose.msra.mxu0 %v197
  %291 = vmatprep.subr.mxu0 0.0
  %292 = vmatpush1.xpose.msra.mxu0 %v200
  %293 = vmatprep.subr.mxu0 0.0
  %294 = vmatpush1.xpose.msra.mxu0 %v203
  %295 = vmatprep.subr.mxu0 0.0
  %296 = vmatpush1.xpose.msra.mxu0 %v206
  %297 = vmatprep.subr.mxu0 0.0
  %298 = vmatpush1.xpose.msra.mxu0 %v209
  %299 = vmatprep.subr.mxu0 0.0
  %300 = vmatpush1.xpose.msra.mxu0 %v212
  %301 = vmatprep.subr.mxu0 0.0
  %302 = vmatpush1.xpose.msra.mxu0 %v215
  %303 = vmatprep.subr.mxu0 0.0
  %304 = vmatpush1.xpose.msra.mxu0 %v218
  %305 = vmatprep.subr.mxu0 0.0
  %306 = vmatpush1.xpose.msra.mxu0 %v221
  %307 = vmatprep.subr.mxu0 0.0
  %308 = vmatpush1.xpose.msra.mxu0 %v224
  %309 = vmatprep.subr.mxu0 0.0
  %310 = vmatpush1.xpose.msra.mxu0 %v227
  %311 = vmatprep.subr.mxu0 0.0
  %312 = vmatpush1.xpose.msra.mxu0 %v230
  %313 = vmatprep.subr.mxu0 0.0
  %314 = vmatpush1.xpose.msra.mxu0 %v233
  %315 = vmatprep.subr.mxu0 0.0
  %316 = vmatpush1.xpose.msra.mxu0 %v236
  %317 = vmatprep.subr.mxu0 0.0
  %318 = vmatpush1.xpose.msra.mxu0 %v239
  %319 = vmatprep.subr.mxu0 0.0
  %320 = vmatpush1.xpose.msra.mxu0 %v242
  %321 = vmatprep.subr.mxu0 0.0
  %322 = vmatpush1.xpose.msra.mxu0 %v245
  %323 = vmatprep.subr.mxu0 0.0
  %324 = vmatpush1.xpose.msra.mxu0 %v248
  %325 = vmatprep.subr.mxu0 0.0
  %326 = vmatpush1.xpose.msra.mxu0 %v251
  %327 = vmatprep.subr.mxu0 0.0
  %328 = vmatpush1.xpose.msra.mxu0 %v254
  %329 = vmatprep.subr.mxu0 0.0
  %330 = vmatpush1.xpose.msra.mxu0 %v257
  %331 = vmatprep.subr.mxu0 0.0
  %332 = vmatpush1.xpose.msra.mxu0 %v260
  %333 = vmatprep.subr.mxu0 0.0
  %334 = vmatpush1.xpose.msra.mxu0 %v263
  %335 = vmatprep.subr.mxu0 0.0
  %336 = vmatpush1.xpose.msra.mxu0 %v266
  %337 = vmatprep.subr.mxu0 0.0
  %338 = vmatpush1.xpose.msra.mxu0 %v269
  %339 = vmatprep.subr.mxu0 0.0
  %340 = vmatpush1.xpose.msra.mxu0 %v272
  %341 = vmatprep.subr.mxu0 0.0
  %342 = vmatpush1.xpose.msra.mxu0 %v275
  %343 = vmatprep.subr.mxu0 0.0
  %344 = vmatpush1.xpose.msra.mxu0 %v278
  %345 = vmatprep.subr.mxu0 0.0
  %346 = vmatpush1.xpose.msra.mxu0 %v281
  %347 = vmatprep.mubr.f32.mxu0 0.0
  %348 = vmatmul.mubr.f32.gmra.mrb[0].mxu0 %v176
  %v349 = vpop.f32.mrb[0].mxu0
  %v350 = vadd.f32 0.0, %v349
  %v351 = vpop.f32.mrb[0].mxu0
  %v352 = vadd.f32 0.0, %v351
  %353 = vmatprep.mubr.f32.mxu0 0.0
  %354 = vmatmul.mubr.f32.gmra.mrb[0].mxu0 %v179
  %v355 = vpop.f32.mrb[0].mxu0
  %v356 = vadd.f32 0.0, %v355
  %v357 = vpop.f32.mrb[0].mxu0
  %v358 = vadd.f32 0.0, %v357
  %359 = vmatprep.mubr.f32.mxu0 0.0
  %360 = vmatmul.mubr.f32.gmra.mrb[0].mxu0 %v182
  %v361 = vpop.f32.mrb[0].mxu0
  %v362 = vadd.f32 0.0, %v361
  %v363 = vpop.f32.mrb[0].mxu0
  %v364 = vadd.f32 0.0, %v363
  %365 = vmatprep.mubr.f32.mxu0 0.0
  %366 = vmatmul.mubr.f32.gmra.mrb[0].mxu0 %v185
  %v367 = vpop.f32.mrb[0].mxu0
  %v368 = vadd.f32 0.0, %v367
  %v369 = vpop.f32.mrb[0].mxu0
  %v370 = vadd.f32 0.0, %v369
  %371 = vdwg.mxu0
  %v373 = vsel %vm174, %v166, 0
  %v376 = vsel %vm174, %v167, 0
  %v379 = vsel %vm174, %v168, 0
  %v382 = vsel %vm174, %v169, 0
  %v385 = vsel %vm174, %v98, 0
  %v388 = vsel %vm174, %v99, 0
  %v391 = vsel %vm174, %v100, 0
  %v394 = vsel %vm174, %v101, 0
  %v397 = vsel %vm174, %v102, 0
  %v400 = vsel %vm174, %v103, 0
  %v403 = vsel %vm174, %v104, 0
  %v406 = vsel %vm174, %v105, 0
  %v409 = vsel %vm174, %v106, 0
  %v412 = vsel %vm174, %v107, 0
  %v415 = vsel %vm174, %v108, 0
  %v418 = vsel %vm174, %v109, 0
  %v421 = vsel %vm174, %v110, 0
  %v424 = vsel %vm174, %v111, 0
  %v427 = vsel %vm174, %v112, 0
  %v430 = vsel %vm174, %v113, 0
  %v433 = vsel %vm174, %v114, 0
  %v436 = vsel %vm174, %v115, 0
  %v439 = vsel %vm174, %v116, 0
  %v442 = vsel %vm174, %v117, 0
  %v445 = vsel %vm174, %v118, 0
  %v448 = vsel %vm174, %v119, 0
  %v451 = vsel %vm174, %v120, 0
  %v454 = vsel %vm174, %v121, 0
  %v457 = vsel %vm174, %v122, 0
  %v460 = vsel %vm174, %v123, 0
  %v463 = vsel %vm174, %v124, 0
  %v466 = vsel %vm174, %v125, 0
  %v469 = vsel %vm174, %v126, 0
  %v472 = vsel %vm174, %v127, 0
  %v475 = vsel %vm174, %v128, 0
  %v478 = vsel %vm174, %v129, 0
  %480 = vmatprep.subr.mxu0 0.0
  %481 = vmatpush1.xpose.msra.mxu0 %v385
  %482 = vmatprep.subr.mxu0 0.0
  %483 = vmatpush1.xpose.msra.mxu0 %v388
  %484 = vmatprep.subr.mxu0 0.0
  %485 = vmatpush1.xpose.msra.mxu0 %v391
  %486 = vmatprep.subr.mxu0 0.0
  %487 = vmatpush1.xpose.msra.mxu0 %v394
  %488 = vmatprep.subr.mxu0 0.0
  %489 = vmatpush1.xpose.msra.mxu0 %v397
  %490 = vmatprep.subr.mxu0 0.0
  %491 = vmatpush1.xpose.msra.mxu0 %v400
  %492 = vmatprep.subr.mxu0 0.0
  %493 = vmatpush1.xpose.msra.mxu0 %v403
  %494 = vmatprep.subr.mxu0 0.0
  %495 = vmatpush1.xpose.msra.mxu0 %v406
  %496 = vmatprep.subr.mxu0 0.0
  %497 = vmatpush1.xpose.msra.mxu0 %v409
  %498 = vmatprep.subr.mxu0 0.0
  %499 = vmatpush1.xpose.msra.mxu0 %v412
  %500 = vmatprep.subr.mxu0 0.0
  %501 = vmatpush1.xpose.msra.mxu0 %v415
  %502 = vmatprep.subr.mxu0 0.0
  %503 = vmatpush1.xpose.msra.mxu0 %v418
  %504 = vmatprep.subr.mxu0 0.0
  %505 = vmatpush1.xpose.msra.mxu0 %v421
  %506 = vmatprep.subr.mxu0 0.0
  %507 = vmatpush1.xpose.msra.mxu0 %v424
  %508 = vmatprep.subr.mxu0 0.0
  %509 = vmatpush1.xpose.msra.mxu0 %v427
  %510 = vmatprep.subr.mxu0 0.0
  %511 = vmatpush1.xpose.msra.mxu0 %v430
  %512 = vmatprep.subr.mxu0 0.0
  %513 = vmatpush1.xpose.msra.mxu0 %v433
  %514 = vmatprep.subr.mxu0 0.0
  %515 = vmatpush1.xpose.msra.mxu0 %v436
  %516 = vmatprep.subr.mxu0 0.0
  %517 = vmatpush1.xpose.msra.mxu0 %v439
  %518 = vmatprep.subr.mxu0 0.0
  %519 = vmatpush1.xpose.msra.mxu0 %v442
  %520 = vmatprep.subr.mxu0 0.0
  %521 = vmatpush1.xpose.msra.mxu0 %v445
  %522 = vmatprep.subr.mxu0 0.0
  %523 = vmatpush1.xpose.msra.mxu0 %v448
  %524 = vmatprep.subr.mxu0 0.0
  %525 = vmatpush1.xpose.msra.mxu0 %v451
  %526 = vmatprep.subr.mxu0 0.0
  %527 = vmatpush1.xpose.msra.mxu0 %v454
  %528 = vmatprep.subr.mxu0 0.0
  %529 = vmatpush1.xpose.msra.mxu0 %v457
  %530 = vmatprep.subr.mxu0 0.0
  %531 = vmatpush1.xpose.msra.mxu0 %v460
  %532 = vmatprep.subr.mxu0 0.0
  %533 = vmatpush1.xpose.msra.mxu0 %v463
  %534 = vmatprep.subr.mxu0 0.0
  %535 = vmatpush1.xpose.msra.mxu0 %v466
  %536 = vmatprep.subr.mxu0 0.0
  %537 = vmatpush1.xpose.msra.mxu0 %v469
  %538 = vmatprep.subr.mxu0 0.0
  %539 = vmatpush1.xpose.msra.mxu0 %v472
  %540 = vmatprep.subr.mxu0 0.0
  %541 = vmatpush1.xpose.msra.mxu0 %v475
  %542 = vmatprep.subr.mxu0 0.0
  %543 = vmatpush1.xpose.msra.mxu0 %v478
  %544 = vmatprep.mubr.f32.mxu0 0.0
  %545 = vmatmul.mubr.f32.gmra.mrb[0].mxu0 %v373
  %v546 = vpop.f32.mrb[0].mxu0
  %v547 = vadd.f32 0.0, %v546
  %v548 = vpop.f32.mrb[0].mxu0
  %v549 = vadd.f32 0.0, %v548
  %550 = vmatprep.mubr.f32.mxu0 0.0
  %551 = vmatmul.mubr.f32.gmra.mrb[0].mxu0 %v376
  %v552 = vpop.f32.mrb[0].mxu0
  %v553 = vadd.f32 0.0, %v552
  %v554 = vpop.f32.mrb[0].mxu0
  %v555 = vadd.f32 0.0, %v554
  %556 = vmatprep.mubr.f32.mxu0 0.0
  %557 = vmatmul.mubr.f32.gmra.mrb[0].mxu0 %v379
  %v558 = vpop.f32.mrb[0].mxu0
  %v559 = vadd.f32 0.0, %v558
  %v560 = vpop.f32.mrb[0].mxu0
  %v561 = vadd.f32 0.0, %v560
  %562 = vmatprep.mubr.f32.mxu0 0.0
  %563 = vmatmul.mubr.f32.gmra.mrb[0].mxu0 %v382
  %v564 = vpop.f32.mrb[0].mxu0
  %v565 = vadd.f32 0.0, %v564
  %v566 = vpop.f32.mrb[0].mxu0
  %v567 = vadd.f32 0.0, %v566
  %568 = vdwg.mxu0
  %v569 = vlaneseq
  %v570 = vshrl.u32 %v569, 7
  %v571 = vadd.s32 %v570, 8
  %v572 = vadd.s32 %v570, 16
  %v573 = vadd.s32 %v570, 24
  %v574 = vlaneseq
  %v575 = vand.u32 %v574, 127
  %v576 = vadd.s32 %v575, 128
  %s577 = sadd.s32 0, 0
  %s578 = smul.u32 %s577, 256
  %v579 = vstv %s578
  %v580 = vadd.s32 %v575, %v579
  %v581 = vadd.s32 %v576, %v579
  %vm582 = vcmp.lt.s32.totalorder %v580, 200
  %vm583 = vcmp.lt.s32.totalorder %v581, 200
  %v584 = vsel %vm582, 1, 0
  %v585 = vsel %vm583, 1, 0
  %v586 = vcvt.s32.f32 %v584
  %v587 = vcvt.s32.f32 %v585
  %vm588 = vcmp.eq.s32.totalorder %v170, 0
  %vm589 = vcmp.eq.s32.totalorder %v171, 0
  %vm590 = vcmp.eq.s32.totalorder %v172, 0
  %vm591 = vcmp.eq.s32.totalorder %v173, 0
  %v592 = vsel %vm588, 1, 0
  %v593 = vsel %vm589, 1, 0
  %v594 = vsel %vm590, 1, 0
  %v595 = vsel %vm591, 1, 0
  %596 = vset.pattern.permute.xlu0 0
  %597 = vperm.xlu0 %596, %v592
  %v598 = vpop.permute.xlu0 %597
  %599 = vset.pattern.permute.xlu0 0
  %600 = vperm.xlu0 %599, %v593
  %v601 = vpop.permute.xlu0 %600
  %602 = vset.pattern.permute.xlu0 0
  %603 = vperm.xlu0 %602, %v594
  %v604 = vpop.permute.xlu0 %603
  %605 = vset.pattern.permute.xlu0 0
  %606 = vperm.xlu0 %605, %v595
  %v607 = vpop.permute.xlu0 %606
  %vm608 = vcmp.eq.s32.totalorder %v598, 1
  %vm609 = vcmp.eq.s32.totalorder %v601, 1
  %vm610 = vcmp.eq.s32.totalorder %v604, 1
  %vm611 = vcmp.eq.s32.totalorder %v607, 1
  %v612 = vsel %vm608, %v350, -inf
  %v613 = vsel %vm608, %v352, -inf
  %v614 = vsel %vm609, %v356, -inf
  %v615 = vsel %vm609, %v358, -inf
  %v616 = vsel %vm610, %v362, -inf
  %v617 = vsel %vm610, %v364, -inf
  %v618 = vsel %vm611, %v368, -inf
  %v619 = vsel %vm611, %v370, -inf
  %v620 = vmax.f32 %v612, %v616
  %v621 = vmax.f32 %v614, %v618
  %v622 = vmax.f32 %v620, %v621
  %v623 = vrot.slane %v622, 4
  %v624 = vmax.f32 %v622, %v623
  %v625 = vrot.slane %v624, 2
  %v626 = vmax.f32 %v624, %v625
  %v627 = vrot.slane %v626, 1
  %v628 = vmax.f32 %v626, %v627
  %v629 = vmax.f32 %v613, %v617
  %v630 = vmax.f32 %v615, %v619
  %v631 = vmax.f32 %v629, %v630
  %v632 = vrot.slane %v631, 4
  %v633 = vmax.f32 %v631, %v632
  %v634 = vrot.slane %v633, 2
  %v635 = vmax.f32 %v633, %v634
  %v636 = vrot.slane %v635, 1
  %v637 = vmax.f32 %v635, %v636
  %v638 = vsub.f32 %v350, %v628
  %v639 = vsub.f32 %v352, %v637
  %v640 = vsub.f32 %v356, %v628
  %v641 = vsub.f32 %v358, %v637
  %v642 = vsub.f32 %v362, %v628
  %v643 = vsub.f32 %v364, %v637
  %v644 = vsub.f32 %v368, %v628
  %v645 = vsub.f32 %v370, %v637
  %v646 = vmul.f32 %v638, 1.442695
  %v647 = vpow.pop %v646
  %v648 = vmul.f32 %v639, 1.442695
  %v649 = vpow.pop %v648
  %v650 = vmul.f32 %v640, 1.442695
  %v651 = vpow.pop %v650
  %v652 = vmul.f32 %v641, 1.442695
  %v653 = vpow.pop %v652
  %v654 = vmul.f32 %v642, 1.442695
  %v655 = vpow.pop %v654
  %v656 = vmul.f32 %v643, 1.442695
  %v657 = vpow.pop %v656
  %v658 = vmul.f32 %v644, 1.442695
  %v659 = vpow.pop %v658
  %v660 = vmul.f32 %v645, 1.442695
  %v661 = vpow.pop %v660
  %v662 = vsel %vm608, %v647, 0.0
  %v663 = vsel %vm608, %v649, 0.0
  %v664 = vsel %vm609, %v651, 0.0
  %v665 = vsel %vm609, %v653, 0.0
  %v666 = vsel %vm610, %v655, 0.0
  %v667 = vsel %vm610, %v657, 0.0
  %v668 = vsel %vm611, %v659, 0.0
  %v669 = vsel %vm611, %v661, 0.0
  %v670 = vadd.f32 %v662, %v664
  %v671 = vadd.f32 %v670, %v666
  %v672 = vadd.f32 %v671, %v668
  %v673 = vrot.slane %v672, 4
  %v674 = vadd.f32 %v672, %v673
  %v675 = vrot.slane %v674, 2
  %v676 = vadd.f32 %v674, %v675
  %v677 = vrot.slane %v676, 1
  %v678 = vadd.f32 %v676, %v677
  %v679 = vadd.f32 %v663, %v665
  %v680 = vadd.f32 %v679, %v667
  %v681 = vadd.f32 %v680, %v669
  %v682 = vrot.slane %v681, 4
  %v683 = vadd.f32 %v681, %v682
  %v684 = vrot.slane %v683, 2
  %v685 = vadd.f32 %v683, %v684
  %v686 = vrot.slane %v685, 1
  %v687 = vadd.f32 %v685, %v686
  %v688 = vlog2.pop %v678
  %v689 = vmul.f32 %v688, 0.6931472
  %v690 = vlog2.pop %v687
  %v691 = vmul.f32 %v690, 0.6931472
  %v692 = vadd.f32 %v628, %v689
  %v693 = vadd.f32 %v637, %v691
  %v694 = vld [vmem:[%s86] ss:$4 sm:$0x3]
  %v695 = vlaneseq
  %v696 = vshrl.u32 %v695, 7
  %v697 = vsub.s32 0, %v696
  %v698 = vrot.slane %v694, %v697
  %v699 = vlaneseq
  %v700 = vshrl.u32 %v699, 7
  %v701 = vsub.s32 1, %v700
  %v702 = vrot.slane %v694, %v701
  %vm703 = vcmp.eq.s32.totalorder %v570, %v698
  %vm704 = vcmp.eq.s32.totalorder %v570, %v702
  %vm705 = vcmp.eq.s32.totalorder %v571, %v698
  %vm706 = vcmp.eq.s32.totalorder %v571, %v702
  %vm707 = vcmp.eq.s32.totalorder %v572, %v698
  %vm708 = vcmp.eq.s32.totalorder %v572, %v702
  %vm709 = vcmp.eq.s32.totalorder %v573, %v698
  %vm710 = vcmp.eq.s32.totalorder %v573, %v702
  %v711 = vsel %vm703, %v350, 0.0
  %v712 = vsel %vm704, %v352, 0.0
  %v713 = vsel %vm705, %v356, 0.0
  %v714 = vsel %vm706, %v358, 0.0
  %v715 = vsel %vm707, %v362, 0.0
  %v716 = vsel %vm708, %v364, 0.0
  %v717 = vsel %vm709, %v368, 0.0
  %v718 = vsel %vm710, %v370, 0.0
  %v719 = vadd.f32 %v711, %v713
  %v720 = vadd.f32 %v719, %v715
  %v721 = vadd.f32 %v720, %v717
  %v722 = vrot.slane %v721, 4
  %v723 = vadd.f32 %v721, %v722
  %v724 = vrot.slane %v723, 2
  %v725 = vadd.f32 %v723, %v724
  %v726 = vrot.slane %v725, 1
  %v727 = vadd.f32 %v725, %v726
  %v728 = vadd.f32 %v712, %v714
  %v729 = vadd.f32 %v728, %v716
  %v730 = vadd.f32 %v729, %v718
  %v731 = vrot.slane %v730, 4
  %v732 = vadd.f32 %v730, %v731
  %v733 = vrot.slane %v732, 2
  %v734 = vadd.f32 %v732, %v733
  %v735 = vrot.slane %v734, 1
  %v736 = vadd.f32 %v734, %v735
  %v737 = vsub.f32 %v727, %v692
  %v738 = vsub.f32 %v736, %v693
  %v739 = vadd.f32 %v737, 0.0
  %v740 = vadd.f32 %v738, 0.0
  %vm741 = vcmp.eq.s32.totalorder %v170, 1
  %vm742 = vcmp.eq.s32.totalorder %v171, 1
  %vm743 = vcmp.eq.s32.totalorder %v172, 1
  %vm744 = vcmp.eq.s32.totalorder %v173, 1
  %v745 = vsel %vm741, 1, 0
  %v746 = vsel %vm742, 1, 0
  %v747 = vsel %vm743, 1, 0
  %v748 = vsel %vm744, 1, 0
  %749 = vset.pattern.permute.xlu0 0
  %750 = vperm.xlu0 %749, %v745
  %v751 = vpop.permute.xlu0 %750
  %752 = vset.pattern.permute.xlu0 0
  %753 = vperm.xlu0 %752, %v746
  %v754 = vpop.permute.xlu0 %753
  %755 = vset.pattern.permute.xlu0 0
  %756 = vperm.xlu0 %755, %v747
  %v757 = vpop.permute.xlu0 %756
  %758 = vset.pattern.permute.xlu0 0
  %759 = vperm.xlu0 %758, %v748
  %v760 = vpop.permute.xlu0 %759
  %vm761 = vcmp.eq.s32.totalorder %v751, 1
  %vm762 = vcmp.eq.s32.totalorder %v754, 1
  %vm763 = vcmp.eq.s32.totalorder %v757, 1
  %vm764 = vcmp.eq.s32.totalorder %v760, 1
  %v765 = vsel %vm761, %v350, -inf
  %v766 = vsel %vm761, %v352, -inf
  %v767 = vsel %vm762, %v356, -inf
  %v768 = vsel %vm762, %v358, -inf
  %v769 = vsel %vm763, %v362, -inf
  %v770 = vsel %vm763, %v364, -inf
  %v771 = vsel %vm764, %v368, -inf
  %v772 = vsel %vm764, %v370, -inf
  %v773 = vmax.f32 %v765, %v769
  %v774 = vmax.f32 %v767, %v771
  %v775 = vmax.f32 %v773, %v774
  %v776 = vrot.slane %v775, 4
  %v777 = vmax.f32 %v775, %v776
  %v778 = vrot.slane %v777, 2
  %v779 = vmax.f32 %v777, %v778
  %v780 = vrot.slane %v779, 1
  %v781 = vmax.f32 %v779, %v780
  %v782 = vmax.f32 %v766, %v770
  %v783 = vmax.f32 %v768, %v772
  %v784 = vmax.f32 %v782, %v783
  %v785 = vrot.slane %v784, 4
  %v786 = vmax.f32 %v784, %v785
  %v787 = vrot.slane %v786, 2
  %v788 = vmax.f32 %v786, %v787
  %v789 = vrot.slane %v788, 1
  %v790 = vmax.f32 %v788, %v789
  %v791 = vsub.f32 %v350, %v781
  %v792 = vsub.f32 %v352, %v790
  %v793 = vsub.f32 %v356, %v781
  %v794 = vsub.f32 %v358, %v790
  %v795 = vsub.f32 %v362, %v781
  %v796 = vsub.f32 %v364, %v790
  %v797 = vsub.f32 %v368, %v781
  %v798 = vsub.f32 %v370, %v790
  %v799 = vmul.f32 %v791, 1.442695
  %v800 = vpow.pop %v799
  %v801 = vmul.f32 %v792, 1.442695
  %v802 = vpow.pop %v801
  %v803 = vmul.f32 %v793, 1.442695
  %v804 = vpow.pop %v803
  %v805 = vmul.f32 %v794, 1.442695
  %v806 = vpow.pop %v805
  %v807 = vmul.f32 %v795, 1.442695
  %v808 = vpow.pop %v807
  %v809 = vmul.f32 %v796, 1.442695
  %v810 = vpow.pop %v809
  %v811 = vmul.f32 %v797, 1.442695
  %v812 = vpow.pop %v811
  %v813 = vmul.f32 %v798, 1.442695
  %v814 = vpow.pop %v813
  %v815 = vsel %vm761, %v800, 0.0
  %v816 = vsel %vm761, %v802, 0.0
  %v817 = vsel %vm762, %v804, 0.0
  %v818 = vsel %vm762, %v806, 0.0
  %v819 = vsel %vm763, %v808, 0.0
  %v820 = vsel %vm763, %v810, 0.0
  %v821 = vsel %vm764, %v812, 0.0
  %v822 = vsel %vm764, %v814, 0.0
  %v823 = vadd.f32 %v815, %v817
  %v824 = vadd.f32 %v823, %v819
  %v825 = vadd.f32 %v824, %v821
  %v826 = vrot.slane %v825, 4
  %v827 = vadd.f32 %v825, %v826
  %v828 = vrot.slane %v827, 2
  %v829 = vadd.f32 %v827, %v828
  %v830 = vrot.slane %v829, 1
  %v831 = vadd.f32 %v829, %v830
  %v832 = vadd.f32 %v816, %v818
  %v833 = vadd.f32 %v832, %v820
  %v834 = vadd.f32 %v833, %v822
  %v835 = vrot.slane %v834, 4
  %v836 = vadd.f32 %v834, %v835
  %v837 = vrot.slane %v836, 2
  %v838 = vadd.f32 %v836, %v837
  %v839 = vrot.slane %v838, 1
  %v840 = vadd.f32 %v838, %v839
  %v841 = vlog2.pop %v831
  %v842 = vmul.f32 %v841, 0.6931472
  %v843 = vlog2.pop %v840
  %v844 = vmul.f32 %v843, 0.6931472
  %v845 = vadd.f32 %v781, %v842
  %v846 = vadd.f32 %v790, %v844
  %s847 = scalar_lea.vmem %s86, 1
  %v848 = vld [vmem:[%s847] ss:$4 sm:$0x3]
  %v849 = vlaneseq
  %v850 = vshrl.u32 %v849, 7
  %v851 = vsub.s32 0, %v850
  %v852 = vrot.slane %v848, %v851
  %v853 = vlaneseq
  %v854 = vshrl.u32 %v853, 7
  %v855 = vsub.s32 1, %v854
  %v856 = vrot.slane %v848, %v855
  %vm857 = vcmp.eq.s32.totalorder %v570, %v852
  %vm858 = vcmp.eq.s32.totalorder %v570, %v856
  %vm859 = vcmp.eq.s32.totalorder %v571, %v852
  %vm860 = vcmp.eq.s32.totalorder %v571, %v856
  %vm861 = vcmp.eq.s32.totalorder %v572, %v852
  %vm862 = vcmp.eq.s32.totalorder %v572, %v856
  %vm863 = vcmp.eq.s32.totalorder %v573, %v852
  %vm864 = vcmp.eq.s32.totalorder %v573, %v856
  %v865 = vsel %vm857, %v350, 0.0
  %v866 = vsel %vm858, %v352, 0.0
  %v867 = vsel %vm859, %v356, 0.0
  %v868 = vsel %vm860, %v358, 0.0
  %v869 = vsel %vm861, %v362, 0.0
  %v870 = vsel %vm862, %v364, 0.0
  %v871 = vsel %vm863, %v368, 0.0
  %v872 = vsel %vm864, %v370, 0.0
  %v873 = vadd.f32 %v865, %v867
  %v874 = vadd.f32 %v873, %v869
  %v875 = vadd.f32 %v874, %v871
  %v876 = vrot.slane %v875, 4
  %v877 = vadd.f32 %v875, %v876
  %v878 = vrot.slane %v877, 2
  %v879 = vadd.f32 %v877, %v878
  %v880 = vrot.slane %v879, 1
  %v881 = vadd.f32 %v879, %v880
  %v882 = vadd.f32 %v866, %v868
  %v883 = vadd.f32 %v882, %v870
  %v884 = vadd.f32 %v883, %v872
  %v885 = vrot.slane %v884, 4
  %v886 = vadd.f32 %v884, %v885
  %v887 = vrot.slane %v886, 2
  %v888 = vadd.f32 %v886, %v887
  %v889 = vrot.slane %v888, 1
  %v890 = vadd.f32 %v888, %v889
  %v891 = vsub.f32 %v881, %v845
  %v892 = vsub.f32 %v890, %v846
  %v893 = vadd.f32 %v739, %v891
  %v894 = vadd.f32 %v740, %v892
  %v895 = vsel %vm608, %v547, -inf
  %v896 = vsel %vm608, %v549, -inf
  %v897 = vsel %vm609, %v553, -inf
  %v898 = vsel %vm609, %v555, -inf
  %v899 = vsel %vm610, %v559, -inf
  %v900 = vsel %vm610, %v561, -inf
  %v901 = vsel %vm611, %v565, -inf
  %v902 = vsel %vm611, %v567, -inf
  %v903 = vmax.f32 %v895, %v899
  %v904 = vmax.f32 %v897, %v901
  %v905 = vmax.f32 %v903, %v904
  %v906 = vrot.slane %v905, 4
  %v907 = vmax.f32 %v905, %v906
  %v908 = vrot.slane %v907, 2
  %v909 = vmax.f32 %v907, %v908
  %v910 = vrot.slane %v909, 1
  %v911 = vmax.f32 %v909, %v910
  %v912 = vmax.f32 %v896, %v900
  %v913 = vmax.f32 %v898, %v902
  %v914 = vmax.f32 %v912, %v913
  %v915 = vrot.slane %v914, 4
  %v916 = vmax.f32 %v914, %v915
  %v917 = vrot.slane %v916, 2
  %v918 = vmax.f32 %v916, %v917
  %v919 = vrot.slane %v918, 1
  %v920 = vmax.f32 %v918, %v919
  %v921 = vsub.f32 %v547, %v911
  %v922 = vsub.f32 %v549, %v920
  %v923 = vsub.f32 %v553, %v911
  %v924 = vsub.f32 %v555, %v920
  %v925 = vsub.f32 %v559, %v911
  %v926 = vsub.f32 %v561, %v920
  %v927 = vsub.f32 %v565, %v911
  %v928 = vsub.f32 %v567, %v920
  %v929 = vmul.f32 %v921, 1.442695
  %v930 = vpow.pop %v929
  %v931 = vmul.f32 %v922, 1.442695
  %v932 = vpow.pop %v931
  %v933 = vmul.f32 %v923, 1.442695
  %v934 = vpow.pop %v933
  %v935 = vmul.f32 %v924, 1.442695
  %v936 = vpow.pop %v935
  %v937 = vmul.f32 %v925, 1.442695
  %v938 = vpow.pop %v937
  %v939 = vmul.f32 %v926, 1.442695
  %v940 = vpow.pop %v939
  %v941 = vmul.f32 %v927, 1.442695
  %v942 = vpow.pop %v941
  %v943 = vmul.f32 %v928, 1.442695
  %v944 = vpow.pop %v943
  %v945 = vsel %vm608, %v930, 0.0
  %v946 = vsel %vm608, %v932, 0.0
  %v947 = vsel %vm609, %v934, 0.0
  %v948 = vsel %vm609, %v936, 0.0
  %v949 = vsel %vm610, %v938, 0.0
  %v950 = vsel %vm610, %v940, 0.0
  %v951 = vsel %vm611, %v942, 0.0
  %v952 = vsel %vm611, %v944, 0.0
  %v953 = vadd.f32 %v945, %v947
  %v954 = vadd.f32 %v953, %v949
  %v955 = vadd.f32 %v954, %v951
  %v956 = vrot.slane %v955, 4
  %v957 = vadd.f32 %v955, %v956
  %v958 = vrot.slane %v957, 2
  %v959 = vadd.f32 %v957, %v958
  %v960 = vrot.slane %v959, 1
  %v961 = vadd.f32 %v959, %v960
  %v962 = vadd.f32 %v946, %v948
  %v963 = vadd.f32 %v962, %v950
  %v964 = vadd.f32 %v963, %v952
  %v965 = vrot.slane %v964, 4
  %v966 = vadd.f32 %v964, %v965
  %v967 = vrot.slane %v966, 2
  %v968 = vadd.f32 %v966, %v967
  %v969 = vrot.slane %v968, 1
  %v970 = vadd.f32 %v968, %v969
  %v971 = vlog2.pop %v961
  %v972 = vmul.f32 %v971, 0.6931472
  %v973 = vlog2.pop %v970
  %v974 = vmul.f32 %v973, 0.6931472
  %v975 = vadd.f32 %v911, %v972
  %v976 = vadd.f32 %v920, %v974
  %s977 = scalar_lea.vmem %s86, 2
  %v978 = vld [vmem:[%s977] ss:$4 sm:$0x3]
  %v979 = vlaneseq
  %v980 = vshrl.u32 %v979, 7
  %v981 = vsub.s32 0, %v980
  %v982 = vrot.slane %v978, %v981
  %v983 = vlaneseq
  %v984 = vshrl.u32 %v983, 7
  %v985 = vsub.s32 1, %v984
  %v986 = vrot.slane %v978, %v985
  %vm987 = vcmp.eq.s32.totalorder %v570, %v982
  %vm988 = vcmp.eq.s32.totalorder %v570, %v986
  %vm989 = vcmp.eq.s32.totalorder %v571, %v982
  %vm990 = vcmp.eq.s32.totalorder %v571, %v986
  %vm991 = vcmp.eq.s32.totalorder %v572, %v982
  %vm992 = vcmp.eq.s32.totalorder %v572, %v986
  %vm993 = vcmp.eq.s32.totalorder %v573, %v982
  %vm994 = vcmp.eq.s32.totalorder %v573, %v986
  %v995 = vsel %vm987, %v547, 0.0
  %v996 = vsel %vm988, %v549, 0.0
  %v997 = vsel %vm989, %v553, 0.0
  %v998 = vsel %vm990, %v555, 0.0
  %v999 = vsel %vm991, %v559, 0.0
  %v1000 = vsel %vm992, %v561, 0.0
  %v1001 = vsel %vm993, %v565, 0.0
  %v1002 = vsel %vm994, %v567, 0.0
  %v1003 = vadd.f32 %v995, %v997
  %v1004 = vadd.f32 %v1003, %v999
  %v1005 = vadd.f32 %v1004, %v1001
  %v1006 = vrot.slane %v1005, 4
  %v1007 = vadd.f32 %v1005, %v1006
  %v1008 = vrot.slane %v1007, 2
  %v1009 = vadd.f32 %v1007, %v1008
  %v1010 = vrot.slane %v1009, 1
  %v1011 = vadd.f32 %v1009, %v1010
  %v1012 = vadd.f32 %v996, %v998
  %v1013 = vadd.f32 %v1012, %v1000
  %v1014 = vadd.f32 %v1013, %v1002
  %v1015 = vrot.slane %v1014, 4
  %v1016 = vadd.f32 %v1014, %v1015
  %v1017 = vrot.slane %v1016, 2
  %v1018 = vadd.f32 %v1016, %v1017
  %v1019 = vrot.slane %v1018, 1
  %v1020 = vadd.f32 %v1018, %v1019
  %v1021 = vsub.f32 %v1011, %v975
  %v1022 = vsub.f32 %v1020, %v976
  %v1023 = vadd.f32 %v1021, 0.0
  %v1024 = vadd.f32 %v1022, 0.0
  %v1025 = vsel %vm761, %v547, -inf
  %v1026 = vsel %vm761, %v549, -inf
  %v1027 = vsel %vm762, %v553, -inf
  %v1028 = vsel %vm762, %v555, -inf
  %v1029 = vsel %vm763, %v559, -inf
  %v1030 = vsel %vm763, %v561, -inf
  %v1031 = vsel %vm764, %v565, -inf
  %v1032 = vsel %vm764, %v567, -inf
  %v1033 = vmax.f32 %v1025, %v1029
  %v1034 = vmax.f32 %v1027, %v1031
  %v1035 = vmax.f32 %v1033, %v1034
  %v1036 = vrot.slane %v1035, 4
  %v1037 = vmax.f32 %v1035, %v1036
  %v1038 = vrot.slane %v1037, 2
  %v1039 = vmax.f32 %v1037, %v1038
  %v1040 = vrot.slane %v1039, 1
  %v1041 = vmax.f32 %v1039, %v1040
  %v1042 = vmax.f32 %v1026, %v1030
  %v1043 = vmax.f32 %v1028, %v1032
  %v1044 = vmax.f32 %v1042, %v1043
  %v1045 = vrot.slane %v1044, 4
  %v1046 = vmax.f32 %v1044, %v1045
  %v1047 = vrot.slane %v1046, 2
  %v1048 = vmax.f32 %v1046, %v1047
  %v1049 = vrot.slane %v1048, 1
  %v1050 = vmax.f32 %v1048, %v1049
  %v1051 = vsub.f32 %v547, %v1041
  %v1052 = vsub.f32 %v549, %v1050
  %v1053 = vsub.f32 %v553, %v1041
  %v1054 = vsub.f32 %v555, %v1050
  %v1055 = vsub.f32 %v559, %v1041
  %v1056 = vsub.f32 %v561, %v1050
  %v1057 = vsub.f32 %v565, %v1041
  %v1058 = vsub.f32 %v567, %v1050
  %v1059 = vmul.f32 %v1051, 1.442695
  %v1060 = vpow.pop %v1059
  %v1061 = vmul.f32 %v1052, 1.442695
  %v1062 = vpow.pop %v1061
  %v1063 = vmul.f32 %v1053, 1.442695
  %v1064 = vpow.pop %v1063
  %v1065 = vmul.f32 %v1054, 1.442695
  %v1066 = vpow.pop %v1065
  %v1067 = vmul.f32 %v1055, 1.442695
  %v1068 = vpow.pop %v1067
  %v1069 = vmul.f32 %v1056, 1.442695
  %v1070 = vpow.pop %v1069
  %v1071 = vmul.f32 %v1057, 1.442695
  %v1072 = vpow.pop %v1071
  %v1073 = vmul.f32 %v1058, 1.442695
  %v1074 = vpow.pop %v1073
  %v1075 = vsel %vm761, %v1060, 0.0
  %v1076 = vsel %vm761, %v1062, 0.0
  %v1077 = vsel %vm762, %v1064, 0.0
  %v1078 = vsel %vm762, %v1066, 0.0
  %v1079 = vsel %vm763, %v1068, 0.0
  %v1080 = vsel %vm763, %v1070, 0.0
  %v1081 = vsel %vm764, %v1072, 0.0
  %v1082 = vsel %vm764, %v1074, 0.0
  %v1083 = vadd.f32 %v1075, %v1077
  %v1084 = vadd.f32 %v1083, %v1079
  %v1085 = vadd.f32 %v1084, %v1081
  %v1086 = vrot.slane %v1085, 4
  %v1087 = vadd.f32 %v1085, %v1086
  %v1088 = vrot.slane %v1087, 2
  %v1089 = vadd.f32 %v1087, %v1088
  %v1090 = vrot.slane %v1089, 1
  %v1091 = vadd.f32 %v1089, %v1090
  %v1092 = vadd.f32 %v1076, %v1078
  %v1093 = vadd.f32 %v1092, %v1080
  %v1094 = vadd.f32 %v1093, %v1082
  %v1095 = vrot.slane %v1094, 4
  %v1096 = vadd.f32 %v1094, %v1095
  %v1097 = vrot.slane %v1096, 2
  %v1098 = vadd.f32 %v1096, %v1097
  %v1099 = vrot.slane %v1098, 1
  %v1100 = vadd.f32 %v1098, %v1099
  %v1101 = vlog2.pop %v1091
  %v1102 = vmul.f32 %v1101, 0.6931472
  %v1103 = vlog2.pop %v1100
  %v1104 = vmul.f32 %v1103, 0.6931472
  %v1105 = vadd.f32 %v1041, %v1102
  %v1106 = vadd.f32 %v1050, %v1104
  %s1107 = scalar_lea.vmem %s86, 3
  %v1108 = vld [vmem:[%s1107] ss:$4 sm:$0x3]
  %v1109 = vlaneseq
  %v1110 = vshrl.u32 %v1109, 7
  %v1111 = vsub.s32 0, %v1110
  %v1112 = vrot.slane %v1108, %v1111
  %v1113 = vlaneseq
  %v1114 = vshrl.u32 %v1113, 7
  %v1115 = vsub.s32 1, %v1114
  %v1116 = vrot.slane %v1108, %v1115
  %vm1117 = vcmp.eq.s32.totalorder %v570, %v1112
  %vm1118 = vcmp.eq.s32.totalorder %v570, %v1116
  %vm1119 = vcmp.eq.s32.totalorder %v571, %v1112
  %vm1120 = vcmp.eq.s32.totalorder %v571, %v1116
  %vm1121 = vcmp.eq.s32.totalorder %v572, %v1112
  %vm1122 = vcmp.eq.s32.totalorder %v572, %v1116
  %vm1123 = vcmp.eq.s32.totalorder %v573, %v1112
  %vm1124 = vcmp.eq.s32.totalorder %v573, %v1116
  %v1125 = vsel %vm1117, %v547, 0.0
  %v1126 = vsel %vm1118, %v549, 0.0
  %v1127 = vsel %vm1119, %v553, 0.0
  %v1128 = vsel %vm1120, %v555, 0.0
  %v1129 = vsel %vm1121, %v559, 0.0
  %v1130 = vsel %vm1122, %v561, 0.0
  %v1131 = vsel %vm1123, %v565, 0.0
  %v1132 = vsel %vm1124, %v567, 0.0
  %v1133 = vadd.f32 %v1125, %v1127
  %v1134 = vadd.f32 %v1133, %v1129
  %v1135 = vadd.f32 %v1134, %v1131
  %v1136 = vrot.slane %v1135, 4
  %v1137 = vadd.f32 %v1135, %v1136
  %v1138 = vrot.slane %v1137, 2
  %v1139 = vadd.f32 %v1137, %v1138
  %v1140 = vrot.slane %v1139, 1
  %v1141 = vadd.f32 %v1139, %v1140
  %v1142 = vadd.f32 %v1126, %v1128
  %v1143 = vadd.f32 %v1142, %v1130
  %v1144 = vadd.f32 %v1143, %v1132
  %v1145 = vrot.slane %v1144, 4
  %v1146 = vadd.f32 %v1144, %v1145
  %v1147 = vrot.slane %v1146, 2
  %v1148 = vadd.f32 %v1146, %v1147
  %v1149 = vrot.slane %v1148, 1
  %v1150 = vadd.f32 %v1148, %v1149
  %v1151 = vsub.f32 %v1141, %v1105
  %v1152 = vsub.f32 %v1150, %v1106
  %v1153 = vadd.f32 %v1023, %v1151
  %v1154 = vadd.f32 %v1024, %v1152
  %v1155 = vadd.f32 %v893, %v1153
  %v1156 = vadd.f32 %v894, %v1154
  %v1157 = vld [vmem:[%s6] sm:$0x3]
  %v1158 = vmul.f32 %v586, %v1155
  %v1159 = vmul.f32 %v587, %v1156
  %v1162 = vcombine.low %v1158, %v1159
  %v1164 = vunpack.c.l.s4 1966171168
  %v1165 = vunpack.c.0.s8 %v1164
  %v1166 = vlaneseq
  %v1167 = vshrl.u32 %v1166, 7
  %v1168 = vsub.s32 %v1165, %v1167
  %v1169 = vrot.slane %v1162, %v1168
  %v1171 = vunpack.c.l.s4 1966171168
  %v1172 = vunpack.c.0.s8 %v1171
  %v1173 = vlaneseq
  %v1174 = vshrl.u32 %v1173, 7
  %v1175 = vsub.s32 %v1172, %v1174
  %v1176 = vrot.slane %v1169, %v1175
  %v1178 = vadd.f32 %v1157, %v1176
  %v1179 = vlaneseq
  %vm1180 = vcmp.ge.s32.totalorder %v1179, 0
  %vm1181 = vcmp.lt.s32.totalorder %v1179, 256
  %vm1182 = vmand %vm1180, %vm1181
  %1183 = vst.msk [vmem:[%s6] sm:$0x3] %vm1182, %v1178
  // Predicated region
  $region30: #{pcl_cld_loss.1} parent=0 // pred_check
    _
  $region31: #{pcl_cld_loss.1} parent=0 // pred_check_branch
    %1185 = sbr.rel (0) target = $region33
  $region32: #{pcl_cld_loss.1} parent=0 // pred_region
    _
  $region33: #{pcl_cld_loss.1} parent=0 // pred_fallthru
    _
  // Predicated region
  $region34: #{pcl_cld_loss.1} parent=0 // pred_check
    _
  $region35: #{pcl_cld_loss.1} parent=0 // pred_check_branch
    %1187 = sbr.rel (0) target = $region37
  $region36: #{pcl_cld_loss.1} parent=0 // pred_region
    _
  $region37: #{pcl_cld_loss.1} parent=0 // pred_fallthru
    _

</llo_original>
